<compile_context>
chip_gen: v5e
topology: v5e:2x2
jax: 0.10.0
libtpu: 0.0.40
codegen_flags: <defaults>
</compile_context>

<pallas_src>
import functools

import jax
import jax.numpy as jnp
from jax.experimental import pallas as pl
from jax.experimental.pallas import tpu as pltpu

LANE = 128
SUBLANE = 8
TARGET_ROWS = 8192                 # 8192 x 128 f32 = 4 MiB per input block.
VMEM_LIMIT_BYTES = 40 * 1024 * 1024


def _round_up(v, m):
    return ((v + m - 1) // m) * m


def _l2_kernel(x_ref, t_ref, o_ref, *, block_rows, valid_rows,
               blocks_per_split, mask_needed):
    c = pl.program_id(0)   # TensorCore split ("parallel")
    i = pl.program_id(1)   # reduction step within the split ("arbitrary")

    @pl.when(i == 0)
    def _init():
        # The vreg-sized output block doubles as the accumulator (it stays
        # resident across the inner reduction axis); zeroing it is one store.
        o_ref[...] = jnp.zeros_like(o_ref)

    def _block_partial(masked):
        # Upcast in-register; inputs are DMA'd in their native dtype.
        d = x_ref[...].astype(jnp.float32) - t_ref[...].astype(jnp.float32)
        dd = d * d
        if masked:
            g = c * blocks_per_split + i
            row_ids = g * block_rows + jax.lax.broadcasted_iota(
                jnp.int32, dd.shape, 0)
            # Must stay a select: a multiplicative 0/1 mask would propagate
            # NaN/Inf from the undefined padded window.
            dd = jnp.where(row_ids < valid_rows, dd, jnp.float32(0.0))
        # Fold block_rows//8 vregs into one (8, 128) partial: pure VALU adds,
        # no cross-lane/sublane (XLU) work on the hot path.
        return dd.reshape(-1, SUBLANE, LANE).sum(axis=0)

    if not mask_needed:
        o_ref[...] += _block_partial(False)
    else:
        g = c * blocks_per_split + i
        is_full = (g + 1) * block_rows <= valid_rows

        @pl.when(is_full)
        def _full_block():
            o_ref[...] += _block_partial(False)

        @pl.when(jnp.logical_not(is_full))
        def _edge_block():
            o_ref[...] += _block_partial(True)


def _l2_main(x2d, t2d, rows):
    """Sum of (x - t)^2 over a (rows, 128) slab, as an f32 scalar."""
    # block_rows: multiple of 8 (so the in-kernel (..,8,128) fold is exact);
    # blocks may overhang the array end -- that is handled by masking.
    block_rows = min(TARGET_ROWS, _round_up(rows, SUBLANE))
    num_blocks = pl.cdiv(rows, block_rows)

    # Two-way split so v7x's two TensorCores each stream half the blocks.
    # Odd counts replicate (and fully mask) one block on one split; only
    # accept that when the relative waste on single-TC chips is small.
    # TODO(synk): query the TensorCore count (pltpu.get_tpu_info) and skip the
    # odd-count split on 1-TC chips.
    if num_blocks >= 2 and (num_blocks % 2 == 0 or num_blocks >= 8):
        num_splits = 2
    else:
        num_splits = 1
    blocks_per_split = pl.cdiv(num_blocks, num_splits)
    mask_needed = num_splits * blocks_per_split * block_rows != rows

    def in_map(c, i):
        # Clamp so replicated steps (odd num_blocks) stay in bounds; their
        # contribution is masked to zero inside the kernel.
        return (jnp.minimum(c * blocks_per_split + i, num_blocks - 1), 0)

    kernel = functools.partial(
        _l2_kernel,
        block_rows=block_rows,
        valid_rows=rows,
        blocks_per_split=blocks_per_split,
        mask_needed=mask_needed,
    )

    partials = pl.pallas_call(
        kernel,
        out_shape=jax.ShapeDtypeStruct((num_splits * SUBLANE, LANE),
                                       jnp.float32),
        grid_spec=pltpu.PrefetchScalarGridSpec(
            num_scalar_prefetch=0,
            grid=(num_splits, blocks_per_split),
            in_specs=[
                pl.BlockSpec((block_rows, LANE), in_map),
                pl.BlockSpec((block_rows, LANE), in_map),
            ],
            out_specs=pl.BlockSpec((SUBLANE, LANE), lambda c, i: (c, 0)),
        ),
        compiler_params=pltpu.CompilerParams(
            dimension_semantics=("parallel", "arbitrary"),
            vmem_limit_bytes=VMEM_LIMIT_BYTES,
        ),
    )(x2d, t2d)
    # Tiny (<=16, 128) cross-partial reduce in plain JAX.
    return jnp.sum(partials, dtype=jnp.float32)


def l2_loss(x, target):
    """Pallas equivalent of torch.sum((input - target) ** 2) / 2."""
    assert x.shape == target.shape, "input/target must have identical shapes"

    xf = jnp.ravel(x)
    tf = jnp.ravel(target)
    n = xf.size

    n_main = (n // LANE) * LANE
    tail = n - n_main

    total = jnp.float32(0.0)
    if n_main > 0:
        xm = xf if tail == 0 else xf[:n_main]   # prefix slice, no full pad copy
        tm = tf if tail == 0 else tf[:n_main]
        rows = n_main // LANE
        total = total + _l2_main(xm.reshape(rows, LANE),
                                 tm.reshape(rows, LANE), rows)
    if tail > 0:
        # Sub-128-element tail computed in plain JAX instead of padding the
        # whole array in HBM.
        xt = xf[n_main:].astype(jnp.float32)
        tt = tf[n_main:].astype(jnp.float32)
        total = total + jnp.sum((xt - tt) ** 2)
    return total * jnp.float32(0.5)


def _ref_l2(x, t):
    return jnp.sum((x.astype(jnp.float32) - t.astype(jnp.float32)) ** 2) / 2


if __name__ == "__main__":
    key = jax.random.PRNGKey(0)
    keys = jax.random.split(key, 10)

    # Primary check: small NCHW shape consistent with an image-to-image loss.
    x = jax.random.normal(keys[0], (2, 4, 16, 16), dtype=jnp.float32)
    y = jax.random.normal(keys[1], (2, 4, 16, 16), dtype=jnp.float32)
    loss = jax.block_until_ready(l2_loss(x, y))
    ref = _ref_l2(x, y)
    assert jnp.allclose(loss, ref, rtol=1e-5, atol=1e-5), (loss, ref)

    # Two-way split with a masked partial last block (num_blocks = 2).
    xa = jax.random.normal(keys[2], (16284, 128), dtype=jnp.float32)
    ya = jax.random.normal(keys[3], (16284, 128), dtype=jnp.float32)
    la = jax.block_until_ready(l2_loss(xa, ya))
    ra = _ref_l2(xa, ya)
    assert jnp.allclose(la, ra, rtol=1e-4), (la, ra)

    # Multi-step accumulation per split (num_blocks = 4, partial last block).
    xb = jax.random.normal(keys[4], (4 * 8192 - 37, 128), dtype=jnp.float32)
    yb = jax.random.normal(keys[5], (4 * 8192 - 37, 128), dtype=jnp.float32)
    lb = jax.block_until_ready(l2_loss(xb, yb))
    rb = _ref_l2(xb, yb)
    assert jnp.allclose(lb, rb, rtol=1e-4), (lb, rb)

    # Odd num_blocks (= 9): one replicated, fully-masked block; bf16 inputs
    # exercise the in-register upcast path.
    xc = jax.random.normal(keys[6], (9 * 8192, 128), dtype=jnp.bfloat16)
    yc = jax.random.normal(keys[7], (9 * 8192, 128), dtype=jnp.bfloat16)
    lc = jax.block_until_ready(l2_loss(xc, yc))
    rc = _ref_l2(xc, yc)
    assert jnp.allclose(lc, rc, rtol=2e-3), (lc, rc)

    # Rows not a multiple of 8 plus a sub-128 tail (n = 900 = 7*128 + 4).
    xd = jax.random.normal(keys[8], (3, 300), dtype=jnp.float32)
    yd = jax.random.normal(keys[9], (3, 300), dtype=jnp.float32)
    ld = jax.block_until_ready(l2_loss(xd, yd))
    rd = _ref_l2(xd, yd)
    assert jnp.allclose(ld, rd, rtol=1e-5, atol=1e-5), (ld, rd)

    # Element count smaller than one 128-lane row (pure-JAX tail path).
    xe = jax.random.normal(keys[0], (3, 5, 7), dtype=jnp.float32)
    ye = jax.random.normal(keys[1], (3, 5, 7), dtype=jnp.float32)
    le = jax.block_until_ready(l2_loss(xe, ye))
    re = _ref_l2(xe, ye)
    assert jnp.allclose(le, re, rtol=1e-5, atol=1e-5), (le, re)

    print("KERNEL_OK")
</pallas_src>

<mosaic_0001>
module attributes {stable_mosaic.version = 11 : i64} {
  func.func @_l2_kernel(%arg0: i32, %arg1: i32, %arg2: memref<16x128xf32, #tpu.memory_space<vmem>>, %arg3: memref<16x128xf32, #tpu.memory_space<vmem>>, %arg4: memref<8x128xf32, #tpu.memory_space<vmem>>) attributes {dimension_semantics = [#tpu.dimension_semantics<parallel>, #tpu.dimension_semantics<arbitrary>], iteration_bounds = array<i64: 1, 1>, scalar_prefetch = 0 : i64, scratch_operands = 0 : i64, tpu.core_type = #tpu.core_type<tc>, window_params = [{transform_indices = @transform_0, window_bounds = array<i64: 16, 128>}, {transform_indices = @transform_1, window_bounds = array<i64: 16, 128>}, {transform_indices = @transform_2, window_bounds = array<i64: 8, 128>}]} {
    %c0_i32 = arith.constant 0 : i32
    %0 = arith.cmpi eq, %arg1, %c0_i32 : i32
    %1 = arith.extui %0 : i1 to i32
    %c0_i32_0 = arith.constant 0 : i32
    %2 = arith.cmpi ne, %1, %c0_i32_0 : i32
    scf.if %2 {
      %cst_8 = arith.constant 0.000000e+00 : f32
      %12 = vector.broadcast %cst_8 : f32 to vector<8x128xf32>
      %c0_9 = arith.constant 0 : index
      %c0_10 = arith.constant 0 : index
      %13 = vector.load %arg4[%c0_9, %c0_10] : memref<8x128xf32, #tpu.memory_space<vmem>>, vector<8x128xf32>
      tpu.vector_store %arg4[%c0_9, %c0_10], %12 {strides = array<i32>} : memref<8x128xf32, #tpu.memory_space<vmem>>, vector<8x128xf32>,
    } else {
    }
    %c0 = arith.constant 0 : index
    %c0_1 = arith.constant 0 : index
    %3 = vector.load %arg4[%c0, %c0_1] : memref<8x128xf32, #tpu.memory_space<vmem>>, vector<8x128xf32>
    %c0_2 = arith.constant 0 : index
    %c0_3 = arith.constant 0 : index
    %4 = vector.load %arg2[%c0_2, %c0_3] : memref<16x128xf32, #tpu.memory_space<vmem>>, vector<16x128xf32>
    %c0_4 = arith.constant 0 : index
    %c0_5 = arith.constant 0 : index
    %5 = vector.load %arg3[%c0_4, %c0_5] : memref<16x128xf32, #tpu.memory_space<vmem>>, vector<16x128xf32>
    %6 = arith.subf %4, %5 : vector<16x128xf32>
    %7 = arith.mulf %6, %6 : vector<16x128xf32>
    %8 = vector.shape_cast %7 : vector<16x128xf32> to vector<2x8x128xf32>
    %cst = arith.constant dense<0.000000e+00> : vector<8x128xf32>
    %9 = vector.multi_reduction <add>, %8, %cst [0] : vector<2x8x128xf32> to vector<8x128xf32>
    %10 = arith.addf %3, %9 : vector<8x128xf32>
    %c0_6 = arith.constant 0 : index
    %c0_7 = arith.constant 0 : index
    %11 = vector.load %arg4[%c0_6, %c0_7] : memref<8x128xf32, #tpu.memory_space<vmem>>, vector<8x128xf32>
    tpu.vector_store %arg4[%c0_6, %c0_7], %10 {strides = array<i32>} : memref<8x128xf32, #tpu.memory_space<vmem>>, vector<8x128xf32>,
    return
  }
  func.func @transform_0(%arg0: i32, %arg1: i32) -> (i32, i32) {
    %c1_i32 = arith.constant 1 : i32
    %0 = arith.muli %arg0, %c1_i32 : i32
    %1 = arith.addi %0, %arg1 : i32
    %c0_i32 = arith.constant 0 : i32
    %2 = arith.minsi %1, %c0_i32 : i32
    %c0_i32_0 = arith.constant 0 : i32
    %c0_i32_1 = arith.constant 0 : i32
    return %2, %c0_i32_0 : i32, i32
  }
  func.func @transform_1(%arg0: i32, %arg1: i32) -> (i32, i32) {
    %c1_i32 = arith.constant 1 : i32
    %0 = arith.muli %arg0, %c1_i32 : i32
    %1 = arith.addi %0, %arg1 : i32
    %c0_i32 = arith.constant 0 : i32
    %2 = arith.minsi %1, %c0_i32 : i32
    %c0_i32_0 = arith.constant 0 : i32
    %c0_i32_1 = arith.constant 0 : i32
    return %2, %c0_i32_0 : i32, i32
  }
  func.func @transform_2(%arg0: i32, %arg1: i32) -> (i32, i32) {
    %c0_i32 = arith.constant 0 : i32
    %c0_i32_0 = arith.constant 0 : i32
    return %arg0, %c0_i32 : i32, i32
  }
}

</mosaic_0001>

<llo_original>
// kernel: tpu_custom_call.1
$region0: #{tpu_custom_call.1}
  #allocation0 [shape = 'u32[]', space=smem, size = 0x4, offset = 0x4, fixed_abs, tag = 'smem constant byte address 0x4 - core index']
  #allocation1 [shape = 'u32[72,128]{1,0:T(1,128)}', space=vmem, size = 0x9000, scoped, tag = 'internal scratch']
  %s0 = inlined_call_operand.hbm [shape: f32[16,128], index: 0, kind: input, shape index: {}]
  %s1 = inlined_call_operand.hbm [shape: f32[16,128], index: 1, kind: input, shape index: {}]
  %s2 = inlined_call_operand.hbm [shape: f32[8,128], index: 2, kind: output, shape index: {}]
  %s3 = sld [smem:[#allocation0]]
  $region30: #{tpu_custom_call.1} parent=0
    _
  %s5 = ssub.s32 1, %s3
  %s6 = scalar_select 0, %s5, %s3
  $region1: #{tpu_custom_call.1} parent=0
    #allocation2 [shape = 'u8[8192]{0}', space=vmem, size = 0x2000, scoped, tag = 'input window, operand 0, single buffered']
    #allocation3 [shape = 's32[1]{0}', space=sflag, size = 0x4, scoped, tag = 'scoped memory for tpu_custom_call.1']
    #allocation4 [shape = 's32[1]{0}', space=sflag, size = 0x4, scoped, tag = 'scoped memory for tpu_custom_call.1']
    #allocation5 [shape = 'u8[8192]{0}', space=vmem, size = 0x2000, scoped, tag = 'input window, operand 1, single buffered']
    #allocation6 [shape = 's32[1]{0}', space=sflag, size = 0x4, scoped, tag = 'scoped memory for tpu_custom_call.1']
    #allocation7 [shape = 'u8[4096]{0}', space=vmem, size = 0x1000, scoped, tag = 'output window, operand 0, single buffered']
    %7 = vsyncpa [#allocation3], 0
    %8 = vsyncpa [#allocation6], 0
    %9 = vsyncpa [#allocation4], 0
    // Predicated region
    $region2: #{tpu_custom_call.1} parent=1 // pred_check
      _
    $region3: #{tpu_custom_call.1} parent=1 // pred_check_branch
      %11 = sbr.rel (0) target = $region5
    $region4: #{tpu_custom_call.1} parent=1 // pred_region
      %s12 = sadd.s32 0, 0
      %p13 = scmp.lt.s32.totalorder %s12, 0
      %s14 = scalar_select %p13, %s12, 0
      %s15 = smul.u32 2, %s14
      %17 = vsyncadd [#allocation3], 0
      %s18 = smul.addr %s15, 8
      %s19 = scalar_lea.hbm %s0, %s18
      %s20 = sshll.u32 %s19, 4
      %s21 = int_to_ptr.hbm [resolvable:$true] %s20
      %s22 = sshll.u32 [#allocation2], 4
      %s23 = int_to_ptr.vmem [resolvable:$true] %s22
      %28 = dma.hbm_to_vmem [thread:$0]  %s21, 256, %s23, [#allocation3], 128, 128, 8
    $region5: #{tpu_custom_call.1} parent=1 // pred_fallthru
      _
    // Predicated region
    $region6: #{tpu_custom_call.1} parent=1 // pred_check
      _
    $region7: #{tpu_custom_call.1} parent=1 // pred_check_branch
      %30 = sbr.rel (0) target = $region9
    $region8: #{tpu_custom_call.1} parent=1 // pred_region
      %s31 = sadd.s32 0, 0
      %p32 = scmp.lt.s32.totalorder %s31, 0
      %s33 = scalar_select %p32, %s31, 0
      %s34 = smul.u32 2, %s33
      %36 = vsyncadd [#allocation6], 0
      %s37 = smul.addr %s34, 8
      %s38 = scalar_lea.hbm %s1, %s37
      %s39 = sshll.u32 %s38, 4
      %s40 = int_to_ptr.hbm [resolvable:$true] %s39
      %s41 = sshll.u32 [#allocation5], 4
      %s42 = int_to_ptr.vmem [resolvable:$true] %s41
      %47 = dma.hbm_to_vmem [thread:$0]  %s40, 256, %s42, [#allocation6], 128, 128, 8
    $region9: #{tpu_custom_call.1} parent=1 // pred_fallthru
      _
    // Predicated region
    $region10: #{tpu_custom_call.1} parent=1 // pred_check
      _
    $region11: #{tpu_custom_call.1} parent=1 // pred_check_branch
      %49 = sbr.rel (0) target = $region13
    $region12: #{tpu_custom_call.1} parent=1 // pred_region
      %51 = dma.done [#allocation3], 256
    $region13: #{tpu_custom_call.1} parent=1 // pred_fallthru
      _
    // Predicated region
    $region14: #{tpu_custom_call.1} parent=1 // pred_check
      _
    $region15: #{tpu_custom_call.1} parent=1 // pred_check_branch
      %53 = sbr.rel (0) target = $region17
    $region16: #{tpu_custom_call.1} parent=1 // pred_region
      %55 = dma.done [#allocation6], 256
    $region17: #{tpu_custom_call.1} parent=1 // pred_fallthru
      _
    %s56 = sadd.s32 0, 0
    %p57 = scmp.lt.s32.totalorder %s56, 0
    %s58 = scalar_select %p57, %s56, 0
    %s59 = smul.u32 2, %s58
    %s60 = sadd.s32 0, 0
    %p61 = scmp.lt.s32.totalorder %s60, 0
    %s62 = scalar_select %p61, %s60, 0
    %s63 = smul.u32 2, %s62
    %p64 = scmp.eq.s32.totalorder 0, 0
    // Predicated region
    $region18: #{tpu_custom_call.1} parent=1 // pred_check
      %p65 = pneg %p64
    $region19: #{tpu_custom_call.1} parent=1 // pred_check_branch
      %67 = sbr.rel (%p65) target = $region21
    $region20: #{tpu_custom_call.1} parent=1 // pred_region
      %68 = vst [vmem:[#allocation7] sm:$0xff] 0.0
    $region21: #{tpu_custom_call.1} parent=1 // pred_fallthru
      _
    %v69 = vld [vmem:[#allocation7] sm:$0xff]
    %v70 = vld [vmem:[#allocation2] sm:$0xff]
    %v71 = vld [vmem:[#allocation2 + $0x8] sm:$0xff]
    %v72 = vld [vmem:[#allocation5] sm:$0xff]
    %v73 = vld [vmem:[#allocation5 + $0x8] sm:$0xff]
    %v74 = vsub.f32 %v70, %v72
    %v75 = vsub.f32 %v71, %v73
    %v76 = vmul.f32 %v74, %v74
    %v77 = vmul.f32 %v75, %v75
    %v78 = vadd.f32 %v76, %v77
    %v79 = vadd.f32 %v69, %v78
    %80 = vst [vmem:[#allocation7] sm:$0xff] %v79
    // Predicated region
    $region22: #{tpu_custom_call.1} parent=1 // pred_check
      _
    $region23: #{tpu_custom_call.1} parent=1 // pred_check_branch
      %82 = sbr.rel (0) target = $region25
    $region24: #{tpu_custom_call.1} parent=1 // pred_region
      %84 = vsyncadd [#allocation4], 0
      %s86 = sshll.u32 [#allocation7], 4
      %s87 = int_to_ptr.vmem [resolvable:$true] %s86
      %s88 = sshll.u32 %s2, 4
      %s89 = int_to_ptr.hbm [resolvable:$true] %s88
      %91 = dma.vmem_to_hbm [thread:$0]  %s87, 128, %s89, [#allocation4]
    $region25: #{tpu_custom_call.1} parent=1 // pred_fallthru
      _
    // Predicated region
    $region26: #{tpu_custom_call.1} parent=1 // pred_check
      _
    $region27: #{tpu_custom_call.1} parent=1 // pred_check_branch
      %93 = sbr.rel (0) target = $region29
    $region28: #{tpu_custom_call.1} parent=1 // pred_region
      %95 = dma.done [#allocation4], 128
    $region29: #{tpu_custom_call.1} parent=1 // pred_fallthru
      _
    %96 = vsyncpa [#allocation3], 1
    %97 = vsyncpa [#allocation6], 1
    %98 = vsyncpa [#allocation4], 1

</llo_original>
